<compile_context>
chip_gen: v7x
topology: tpu7x:2x2x1
jax: 0.10.0
libtpu: 0.0.40
codegen_flags: <defaults>
</compile_context>

<pallas_src>
import math
import functools

import jax
import jax.numpy as jnp
from jax.experimental import pallas as pl
from jax.experimental.pallas import tpu as pltpu


def _round_up(a, b):
    return (a + b - 1) // b * b


def _moe_gate_sums_kernel(x_ref, wn_ref, xsum_ref, spsum_ref, *,
                          n_valid, tm, nj, compute_dtype):
    """Grid = (core_splits, row_tiles). Per step, for a [tm, H] tile of rows:
         xsum_ref  [1,1,H] += sum_rows(x)                    (MXU ones-dot)
         spsum_ref [1,1,E] += sum_rows(softplus(x @ Wn))     (MXU ones-dot)
    Only boundary / clamped tiles execute the row mask (pl.when-guarded)."""
    i = pl.program_id(0)            # core split (parallel)
    j = pl.program_id(1)            # row-tile index within this core (arbitrary)

    @pl.when(j == 0)
    def _():
        xsum_ref[...] = jnp.zeros_like(xsum_ref)
        spsum_ref[...] = jnp.zeros_like(spsum_ref)

    # Row offset of this tile; must stay in sync with the x index_map.
    row0 = (i * nj + j) * tm

    x = x_ref[...]                                          # [tm, H], native dtype
    xc = x.astype(compute_dtype)                            # in-VMEM cast, hidden under DMA
    z = jnp.dot(xc, wn_ref[...], preferred_element_type=jnp.float32)   # [tm, E] f32
    # numerically-stable softplus: log(1+exp(z)) = max(z,0) + log1p(exp(-|z|))
    sp = jnp.maximum(z, 0.0) + jnp.log1p(jnp.exp(-jnp.abs(z)))

    # Row sums as MXU mat-vec products (f32 accumulate); keeps VPU/XLU free.
    ones_x = jnp.ones((1, tm), x.dtype)
    ones_f = jnp.ones((1, tm), jnp.float32)

    def accumulate(xv, spv):
        xsum_ref[...] += jnp.dot(ones_x, xv, preferred_element_type=jnp.float32)[None]
        spsum_ref[...] += jnp.dot(ones_f, spv, preferred_element_type=jnp.float32)[None]

    @pl.when(row0 + tm <= n_valid)          # full tile: no masking work at all
    def _():
        accumulate(x, sp)

    @pl.when(row0 + tm > n_valid)           # boundary / re-read tile: mask rows >= N
    def _():
        valid = (row0 + jax.lax.broadcasted_iota(jnp.int32, (tm, 1), 0)) < n_valid
        # jnp.where select (not multiply) so stale/uninitialized VMEM in the
        # out-of-bounds rows cannot leak NaN/Inf into the sums.
        accumulate(jnp.where(valid, x, jnp.zeros_like(x)),
                   jnp.where(valid, sp, 0.0))


def moe_gate_sums(x, wn, *, tm=512, num_core_splits=1,
                  compute_dtype=jnp.bfloat16, vmem_limit_bytes=None):
    """Returns (sum_rows(x) [H] f32, sum_rows(softplus(x @ Wn)) [E] f32).

    x is streamed through the kernel at its native dtype (no extra HBM pass);
    wn ([H, E], tiny) is cast to `compute_dtype` in the wrapper.
    Set num_core_splits=2 on v7x (two TensorCores); keep 1 on v5e/v6e."""
    B, S, H = x.shape
    E = wn.shape[1]
    N = B * S

    x2d = x.reshape(N, H)                 # free bitcast, no HBM traffic
    wn = wn.astype(compute_dtype)         # tiny [H, E]
    itemsize = x2d.dtype.itemsize

    C = max(1, int(num_core_splits))
    # Row tile: multiple of 16 (bf16-safe sublane count), clamped for tiny N
    # and by a ~40 MiB double-buffered x working-set cap (v7x has 64 MiB/TC).
    x_ws_cap = 40 * 1024 * 1024
    tm_cap = max(16, (x_ws_cap // (2 * H * itemsize)) // 16 * 16)
    tm = max(16, min(_round_up(int(tm), 16),
                     _round_up(pl.cdiv(N, C), 16),
                     tm_cap))

    nb = pl.cdiv(N, tm)        # total row tiles
    nj = pl.cdiv(nb, C)        # row tiles per core split

    if vmem_limit_bytes is None:
        need = (2 * tm * H * itemsize                 # double-buffered x tiles
                + 2 * H * E * wn.dtype.itemsize       # double-buffered Wn
                + 2 * C * (H + E) * 4)                # resident outputs
        vmem_limit_bytes = int(min(max(int(1.25 * need) + (4 << 20), 32 << 20),
                                   56 << 20))

    kernel = functools.partial(_moe_gate_sums_kernel, n_valid=N, tm=tm, nj=nj,
                               compute_dtype=compute_dtype)

    cost = pl.CostEstimate(
        flops=2 * N * H * (E + 1),
        transcendentals=2 * N * E,
        bytes_accessed=N * H * itemsize + H * E * wn.dtype.itemsize
        + C * (H + E) * 4,
    )

    def x_map(i, j):
        # Clamp so an uneven core split never produces a fully out-of-bounds
        # block; clamped steps re-read the last block and are fully masked.
        lin = i * nj + j
        return (jnp.minimum(lin, nb - 1), 0)

    xsum, spsum = pl.pallas_call(
        kernel,
        out_shape=(
            jax.ShapeDtypeStruct((C, 1, H), jnp.float32),
            jax.ShapeDtypeStruct((C, 1, E), jnp.float32),
        ),
        grid_spec=pltpu.PrefetchScalarGridSpec(
            num_scalar_prefetch=0,
            grid=(C, nj),
            in_specs=[
                pl.BlockSpec((tm, H), x_map),
                # gate_noise weight, constant block (fetched once by the pipeline).
                pl.BlockSpec((H, E), lambda i, j: (0, 0)),
            ],
            out_specs=(
                # One partial-sum row per core; resident across the j (reduction) axis.
                pl.BlockSpec((1, 1, H), lambda i, j: (i, 0, 0)),
                pl.BlockSpec((1, 1, E), lambda i, j: (i, 0, 0)),
            ),
        ),
        compiler_params=pltpu.CompilerParams(
            dimension_semantics=("parallel", "arbitrary"),
            vmem_limit_bytes=vmem_limit_bytes,
        ),
        cost_estimate=cost,
    )(x2d, wn)

    return (xsum.reshape(C, H).sum(axis=0),
            spsum.reshape(C, E).sum(axis=0))


def moe_gate_forward(x, wt, wn, noise, topk, **kwargs):
    """Full MoEGate forward: (selected_gates, indexes).

    wt, wn are stored transposed as [H, E]; noise is the per-expert N(0,1) draw."""
    B, S, H = x.shape
    N = B * S
    x_sum, sp_sum = moe_gate_sums(x, wn, **kwargs)               # [H], [E]
    mean_w = (x_sum @ wt.astype(jnp.float32)
              + sp_sum * noise.astype(jnp.float32)) / jnp.float32(N)   # [E]
    gates, indexes = jax.lax.top_k(mean_w, topk)                 # tiny glue over E experts
    selected_gates = jax.nn.softmax(gates, axis=-1)
    return selected_gates, indexes


def xavier_uniform(key, shape, gain):
    """Matches nn.init.xavier_uniform_ for a [fan_out, fan_in] linear weight."""
    fan_out, fan_in = shape
    bound = gain * math.sqrt(6.0 / (fan_in + fan_out))
    return jax.random.uniform(key, shape, minval=-bound, maxval=bound, dtype=jnp.float32)


if __name__ == "__main__":
    # Small shapes consistent with the module: x [B, S, H]
    B, S, H = 2, 8, 32
    num_experts, topk = 8, 2

    key = jax.random.PRNGKey(0)
    kx, kt, kn, kz = jax.random.split(key, 4)

    x = jax.random.normal(kx, (B, S, H), dtype=jnp.float32)

    gain = 2.0 ** (-0.5)
    # PyTorch Affine weight is [num_experts, hidden]; transpose to [H, E] for x @ W.
    wt = xavier_uniform(kt, (num_experts, H), gain).T
    wn = xavier_uniform(kn, (num_experts, H), gain).T
    # The module draws fresh standard-normal noise each forward; drawn
    # deterministically here and fed into the gate computation.
    noise = jax.random.normal(kz, (num_experts,), dtype=jnp.float32)

    selected_gates, indexes = moe_gate_forward(x, wt, wn, noise, topk)
    jax.block_until_ready((selected_gates, indexes))

    # Pure-JAX reference mirroring the kernel's numerics:
    #   * x streamed / summed in its native f32
    #   * x @ Wn evaluated in bf16 with f32 accumulation
    x2d = x.reshape(-1, H)
    z_ref = jnp.dot(x2d.astype(jnp.bfloat16), wn.astype(jnp.bfloat16),
                    preferred_element_type=jnp.float32)
    w_ref = jnp.dot(x2d, wt) + jax.nn.softplus(z_ref) * noise[None, :]
    mean_ref = w_ref.mean(axis=0)
    g_ref, i_ref = jax.lax.top_k(mean_ref, topk)
    g_ref = jax.nn.softmax(g_ref, axis=-1)
    assert jnp.allclose(selected_gates, g_ref, atol=1e-4), (selected_gates, g_ref)
    assert jnp.array_equal(indexes, i_ref), (indexes, i_ref)

    print("KERNEL_OK")
</pallas_src>

<mosaic_0001>
module attributes {stable_mosaic.version = 11 : i64} {
  func.func @_moe_gate_sums_kernel(%arg0: i32, %arg1: i32, %arg2: memref<16x32xf32, #tpu.memory_space<vmem>>, %arg3: memref<32x8xbf16, #tpu.memory_space<vmem>>, %arg4: memref<1x1x32xf32, #tpu.memory_space<vmem>>, %arg5: memref<1x1x8xf32, #tpu.memory_space<vmem>>) attributes {dimension_semantics = [#tpu.dimension_semantics<parallel>, #tpu.dimension_semantics<arbitrary>], iteration_bounds = array<i64: 1, 1>, scalar_prefetch = 0 : i64, scratch_operands = 0 : i64, tpu.core_type = #tpu.core_type<tc>, window_params = [{transform_indices = @transform_0, window_bounds = array<i64: 16, 32>}, {pipeline_mode = #tpu.pipeline_mode<synchronous>, transform_indices = @transform_1, window_bounds = array<i64: 32, 8>}, {transform_indices = @transform_2, window_bounds = array<i64: 1, 1, 32>}, {transform_indices = @transform_3, window_bounds = array<i64: 1, 1, 8>}]} {
    %c0_i32 = arith.constant 0 : i32
    %0 = arith.cmpi eq, %arg1, %c0_i32 : i32
    %1 = arith.extui %0 : i1 to i32
    %c0_i32_0 = arith.constant 0 : i32
    %2 = arith.cmpi ne, %1, %c0_i32_0 : i32
    scf.if %2 {
      %cst_14 = arith.constant 0.000000e+00 : f32
      %28 = vector.broadcast %cst_14 : f32 to vector<1x1x32xf32>
      %c0_15 = arith.constant 0 : index
      %c0_16 = arith.constant 0 : index
      %c0_17 = arith.constant 0 : index
      %29 = vector.load %arg4[%c0_15, %c0_16, %c0_17] : memref<1x1x32xf32, #tpu.memory_space<vmem>>, vector<1x1x32xf32>
      tpu.vector_store %arg4[%c0_15, %c0_16, %c0_17], %28 {strides = array<i32>} : memref<1x1x32xf32, #tpu.memory_space<vmem>>, vector<1x1x32xf32>,
      %cst_18 = arith.constant 0.000000e+00 : f32
      %30 = vector.broadcast %cst_18 : f32 to vector<1x1x8xf32>
      %c0_19 = arith.constant 0 : index
      %c0_20 = arith.constant 0 : index
      %c0_21 = arith.constant 0 : index
      %31 = vector.load %arg5[%c0_19, %c0_20, %c0_21] : memref<1x1x8xf32, #tpu.memory_space<vmem>>, vector<1x1x8xf32>
      tpu.vector_store %arg5[%c0_19, %c0_20, %c0_21], %30 {strides = array<i32>} : memref<1x1x8xf32, #tpu.memory_space<vmem>>, vector<1x1x8xf32>,
    } else {
    }
    %c1_i32 = arith.constant 1 : i32
    %3 = arith.muli %arg0, %c1_i32 : i32
    %4 = arith.addi %3, %arg1 : i32
    %c16_i32 = arith.constant 16 : i32
    %5 = arith.muli %4, %c16_i32 : i32
    %c0 = arith.constant 0 : index
    %c0_1 = arith.constant 0 : index
    %6 = vector.load %arg2[%c0, %c0_1] : memref<16x32xf32, #tpu.memory_space<vmem>>, vector<16x32xf32>
    %7 = arith.truncf %6 : vector<16x32xf32> to vector<16x32xbf16>
    %c0_2 = arith.constant 0 : index
    %c0_3 = arith.constant 0 : index
    %8 = vector.load %arg3[%c0_2, %c0_3] : memref<32x8xbf16, #tpu.memory_space<vmem>>, vector<32x8xbf16>
    %cst = arith.constant dense<0.000000e+00> : vector<16x8xf32>
    %9 = tpu.matmul %7, %8, %cst {dimension_numbers = #tpu.dot_dimension_numbers<[1], [0], [0], [1], [0, 0, 1, 1], [], []>} : vector<16x32xbf16>, vector<32x8xbf16>, vector<16x8xf32> -> vector<16x8xf32>
    %cst_4 = arith.constant 0.000000e+00 : f32
    %10 = vector.broadcast %cst_4 : f32 to vector<16x8xf32>
    %11 = arith.maximumf %9, %10 : vector<16x8xf32>
    %12 = math.absf %9 : vector<16x8xf32>
    %cst_5 = arith.constant 0.000000e+00 : f32
    %13 = vector.broadcast %cst_5 : f32 to vector<16x8xf32>
    %14 = arith.subf %13, %12 : vector<16x8xf32>
    %15 = math.exp %14 : vector<16x8xf32>
    %16 = math.log1p %15 : vector<16x8xf32>
    %17 = arith.addf %11, %16 : vector<16x8xf32>
    %cst_6 = arith.constant 1.000000e+00 : f32
    %18 = vector.broadcast %cst_6 : f32 to vector<1x16xf32>
    %cst_7 = arith.constant 1.000000e+00 : f32
    %19 = vector.broadcast %cst_7 : f32 to vector<1x16xf32>
    %c16_i32_8 = arith.constant 16 : i32
    %20 = arith.addi %5, %c16_i32_8 : i32
    %c16_i32_9 = arith.constant 16 : i32
    %21 = arith.cmpi sle, %20, %c16_i32_9 : i32
    %22 = arith.extui %21 : i1 to i32
    %c0_i32_10 = arith.constant 0 : i32
    %23 = arith.cmpi ne, %22, %c0_i32_10 : i32
    scf.if %23 {
      %c0_14 = arith.constant 0 : index
      %c0_15 = arith.constant 0 : index
      %c0_16 = arith.constant 0 : index
      %28 = vector.load %arg4[%c0_14, %c0_15, %c0_16] : memref<1x1x32xf32, #tpu.memory_space<vmem>>, vector<1x1x32xf32>
      %cst_17 = arith.constant dense<0.000000e+00> : vector<1x32xf32>
      %29 = tpu.matmul %18, %6, %cst_17 {dimension_numbers = #tpu.dot_dimension_numbers<[1], [0], [0], [1], [0, 0, 1, 1], [], []>} : vector<1x16xf32>, vector<16x32xf32>, vector<1x32xf32> -> vector<1x32xf32>
      %30 = vector.shape_cast %29 : vector<1x32xf32> to vector<1x1x32xf32>
      %31 = arith.addf %28, %30 : vector<1x1x32xf32>
      %c0_18 = arith.constant 0 : index
      %c0_19 = arith.constant 0 : index
      %c0_20 = arith.constant 0 : index
      %32 = vector.load %arg4[%c0_18, %c0_19, %c0_20] : memref<1x1x32xf32, #tpu.memory_space<vmem>>, vector<1x1x32xf32>
      tpu.vector_store %arg4[%c0_18, %c0_19, %c0_20], %31 {strides = array<i32>} : memref<1x1x32xf32, #tpu.memory_space<vmem>>, vector<1x1x32xf32>,
      %c0_21 = arith.constant 0 : index
      %c0_22 = arith.constant 0 : index
      %c0_23 = arith.constant 0 : index
      %33 = vector.load %arg5[%c0_21, %c0_22, %c0_23] : memref<1x1x8xf32, #tpu.memory_space<vmem>>, vector<1x1x8xf32>
      %cst_24 = arith.constant dense<0.000000e+00> : vector<1x8xf32>
      %34 = tpu.matmul %19, %17, %cst_24 {dimension_numbers = #tpu.dot_dimension_numbers<[1], [0], [0], [1], [0, 0, 1, 1], [], []>} : vector<1x16xf32>, vector<16x8xf32>, vector<1x8xf32> -> vector<1x8xf32>
      %35 = vector.shape_cast %34 : vector<1x8xf32> to vector<1x1x8xf32>
      %36 = arith.addf %33, %35 : vector<1x1x8xf32>
      %c0_25 = arith.constant 0 : index
      %c0_26 = arith.constant 0 : index
      %c0_27 = arith.constant 0 : index
      %37 = vector.load %arg5[%c0_25, %c0_26, %c0_27] : memref<1x1x8xf32, #tpu.memory_space<vmem>>, vector<1x1x8xf32>
      tpu.vector_store %arg5[%c0_25, %c0_26, %c0_27], %36 {strides = array<i32>} : memref<1x1x8xf32, #tpu.memory_space<vmem>>, vector<1x1x8xf32>,
    } else {
    }
    %c16_i32_11 = arith.constant 16 : i32
    %24 = arith.addi %5, %c16_i32_11 : i32
    %c16_i32_12 = arith.constant 16 : i32
    %25 = arith.cmpi sgt, %24, %c16_i32_12 : i32
    %26 = arith.extui %25 : i1 to i32
    %c0_i32_13 = arith.constant 0 : i32
    %27 = arith.cmpi ne, %26, %c0_i32_13 : i32
    scf.if %27 {
      %28 = tpu.iota {dimensions = array<i32: 0>} : vector<16x1xi32>
      %29 = vector.broadcast %5 : i32 to vector<16x1xi32>
      %30 = arith.addi %29, %28 : vector<16x1xi32>
      %c16_i32_14 = arith.constant 16 : i32
      %31 = vector.broadcast %c16_i32_14 : i32 to vector<16x1xi32>
      %32 = arith.cmpi slt, %30, %31 : vector<16x1xi32>
      %cst_15 = arith.constant 0.000000e+00 : f32
      %33 = vector.broadcast %cst_15 : f32 to vector<16x32xf32>
      %34 = vector.shape_cast %32 : vector<16x1xi1> to vector<16x1xi1>
      %35 = vector.broadcast %34 : vector<16x1xi1> to vector<16x32xi1>
      %36 = arith.select %35, %6, %33 : vector<16x32xi1>, vector<16x32xf32>
      %cst_16 = arith.constant 0.000000e+00 : f32
      %37 = vector.shape_cast %32 : vector<16x1xi1> to vector<16x1xi1>
      %38 = vector.broadcast %37 : vector<16x1xi1> to vector<16x8xi1>
      %39 = vector.broadcast %cst_16 : f32 to vector<16x8xf32>
      %40 = arith.select %38, %17, %39 : vector<16x8xi1>, vector<16x8xf32>
      %c0_17 = arith.constant 0 : index
      %c0_18 = arith.constant 0 : index
      %c0_19 = arith.constant 0 : index
      %41 = vector.load %arg4[%c0_17, %c0_18, %c0_19] : memref<1x1x32xf32, #tpu.memory_space<vmem>>, vector<1x1x32xf32>
      %cst_20 = arith.constant dense<0.000000e+00> : vector<1x32xf32>
      %42 = tpu.matmul %18, %36, %cst_20 {dimension_numbers = #tpu.dot_dimension_numbers<[1], [0], [0], [1], [0, 0, 1, 1], [], []>} : vector<1x16xf32>, vector<16x32xf32>, vector<1x32xf32> -> vector<1x32xf32>
      %43 = vector.shape_cast %42 : vector<1x32xf32> to vector<1x1x32xf32>
      %44 = arith.addf %41, %43 : vector<1x1x32xf32>
      %c0_21 = arith.constant 0 : index
      %c0_22 = arith.constant 0 : index
      %c0_23 = arith.constant 0 : index
      %45 = vector.load %arg4[%c0_21, %c0_22, %c0_23] : memref<1x1x32xf32, #tpu.memory_space<vmem>>, vector<1x1x32xf32>
      tpu.vector_store %arg4[%c0_21, %c0_22, %c0_23], %44 {strides = array<i32>} : memref<1x1x32xf32, #tpu.memory_space<vmem>>, vector<1x1x32xf32>,
      %c0_24 = arith.constant 0 : index
      %c0_25 = arith.constant 0 : index
      %c0_26 = arith.constant 0 : index
      %46 = vector.load %arg5[%c0_24, %c0_25, %c0_26] : memref<1x1x8xf32, #tpu.memory_space<vmem>>, vector<1x1x8xf32>
      %cst_27 = arith.constant dense<0.000000e+00> : vector<1x8xf32>
      %47 = tpu.matmul %19, %40, %cst_27 {dimension_numbers = #tpu.dot_dimension_numbers<[1], [0], [0], [1], [0, 0, 1, 1], [], []>} : vector<1x16xf32>, vector<16x8xf32>, vector<1x8xf32> -> vector<1x8xf32>
      %48 = vector.shape_cast %47 : vector<1x8xf32> to vector<1x1x8xf32>
      %49 = arith.addf %46, %48 : vector<1x1x8xf32>
      %c0_28 = arith.constant 0 : index
      %c0_29 = arith.constant 0 : index
      %c0_30 = arith.constant 0 : index
      %50 = vector.load %arg5[%c0_28, %c0_29, %c0_30] : memref<1x1x8xf32, #tpu.memory_space<vmem>>, vector<1x1x8xf32>
      tpu.vector_store %arg5[%c0_28, %c0_29, %c0_30], %49 {strides = array<i32>} : memref<1x1x8xf32, #tpu.memory_space<vmem>>, vector<1x1x8xf32>,
    } else {
    }
    return
  }
  func.func @transform_0(%arg0: i32, %arg1: i32) -> (i32, i32) {
    %c1_i32 = arith.constant 1 : i32
    %0 = arith.muli %arg0, %c1_i32 : i32
    %1 = arith.addi %0, %arg1 : i32
    %c0_i32 = arith.constant 0 : i32
    %2 = arith.minsi %1, %c0_i32 : i32
    %c0_i32_0 = arith.constant 0 : i32
    %c0_i32_1 = arith.constant 0 : i32
    return %2, %c0_i32_0 : i32, i32
  }
  func.func @transform_1(%arg0: i32, %arg1: i32) -> (i32, i32) {
    %c0_i32 = arith.constant 0 : i32
    %c0_i32_0 = arith.constant 0 : i32
    %c0_i32_1 = arith.constant 0 : i32
    return %c0_i32, %c0_i32_0 : i32, i32
  }
  func.func @transform_2(%arg0: i32, %arg1: i32) -> (i32, i32, i32) {
    %c0_i32 = arith.constant 0 : i32
    %c0_i32_0 = arith.constant 0 : i32
    %c0_i32_1 = arith.constant 0 : i32
    return %arg0, %c0_i32, %c0_i32_0 : i32, i32, i32
  }
  func.func @transform_3(%arg0: i32, %arg1: i32) -> (i32, i32, i32) {
    %c0_i32 = arith.constant 0 : i32
    %c0_i32_0 = arith.constant 0 : i32
    %c0_i32_1 = arith.constant 0 : i32
    return %arg0, %c0_i32, %c0_i32_0 : i32, i32, i32
  }
}

</mosaic_0001>

<llo_original>
// kernel: tpu_custom_call.1
$region0: #{tpu_custom_call.1}
  #allocation0 [shape = 'u32[]', space=smem, size = 0x4, offset = 0x4, fixed_abs, tag = 'smem constant byte address 0x4 - core index']
  #allocation1 [shape = 'u32[144,128]{1,0:T(1,128)}', space=vmem, size = 0x12000, scoped, tag = 'internal scratch']
  %s0 = inlined_call_operand.vmem [shape: f32[16,32], index: 0, kind: input, shape index: {}]
  %s1 = inlined_call_operand.vmem [shape: bf16[32,8], index: 1, kind: input, shape index: {}]
  %s2 = inlined_call_operand.hbm [shape: f32[1,1,32], index: 2, kind: output, shape index: {0}]
  %s3 = inlined_call_operand.hbm [shape: f32[1,1,8], index: 3, kind: output, shape index: {1}]
  %4 = xla_tuple %s2, %s3
  %s5 = sld [smem:[#allocation0]]
  $region38: #{tpu_custom_call.1} parent=0
    _
  %s7 = ssub.s32 1, %s5
  %s8 = scalar_select 0, %s7, %s5
  $region1: #{tpu_custom_call.1} parent=0
    #allocation2 [shape = 'u8[512]{0}', space=vmem, size = 0x400, scoped, tag = 'output window, operand 0, single buffered']
    #allocation3 [shape = 's32[1]{0}', space=sflag, size = 0x4, scoped, tag = 'scoped memory for tpu_custom_call.1']
    #allocation4 [shape = 'u8[512]{0}', space=vmem, size = 0x400, scoped, tag = 'output window, operand 1, single buffered']
    #allocation5 [shape = 's32[1]{0}', space=sflag, size = 0x4, scoped, tag = 'scoped memory for tpu_custom_call.1']
    %9 = vsyncpa [#allocation3], 0
    %10 = vsyncpa [#allocation5], 0
    // Predicated region
    $region2: #{tpu_custom_call.1} parent=1 // pred_check
      _
    $region3: #{tpu_custom_call.1} parent=1 // pred_check_branch
      %12 = sbr.rel (0) target = $region5
    $region4: #{tpu_custom_call.1} parent=1 // pred_region
      %s13 = sadd.s32 0, 0
      %p14 = scmp.lt.s32.totalorder %s13, 0
      %s15 = scalar_select %p14, %s13, 0
      %s16 = smul.u32 2, %s15
      %p17 = scmp.lt.s32.totalorder %s16, 1
      %s18 = scalar_select %p17, %s16, 1
      %s19 = smul.addr %s18, 8
      %s20 = scalar_lea.vmem %s0, %s19
      %s21 = sadd.s32 0, 0
      %p22 = scmp.lt.s32.totalorder %s21, 0
      %s23 = scalar_select %p22, %s21, 0
      %s24 = smul.u32 2, %s23
    $region5: #{tpu_custom_call.1} parent=1 // pred_fallthru
      _
    // Predicated region
    $region6: #{tpu_custom_call.1} parent=1 // pred_check
      _
    $region7: #{tpu_custom_call.1} parent=1 // pred_check_branch
      %26 = sbr.rel (0) target = $region9
    $region8: #{tpu_custom_call.1} parent=1 // pred_region
      _
    $region9: #{tpu_custom_call.1} parent=1 // pred_fallthru
      _
    %s27 = sadd.s32 0, 0
    %p28 = scmp.lt.s32.totalorder %s27, 0
    %s29 = scalar_select %p28, %s27, 0
    %s30 = smul.u32 2, %s29
    %p31 = scmp.lt.s32.totalorder %s30, 1
    %s32 = scalar_select %p31, %s30, 1
    %s33 = smul.addr %s32, 8
    %s34 = scalar_lea.vmem %s0, %s33
    %s35 = sadd.s32 0, 0
    %p36 = scmp.lt.s32.totalorder %s35, 0
    %s37 = scalar_select %p36, %s35, 0
    %s38 = smul.u32 2, %s37
    %p39 = scmp.lt.s32.totalorder %s38, 1
    %s40 = scalar_select %p39, %s38, 1
    %s41 = smul.addr %s40, 8
    %s42 = scalar_lea.vmem %s0, %s41
    %s43 = sadd.s32 0, 0
    %p44 = scmp.lt.s32.totalorder %s43, 0
    %s45 = scalar_select %p44, %s43, 0
    %s46 = smul.u32 2, %s45
    %p48 = scmp.eq.s32.totalorder 0, 0
    // Predicated region
    $region10: #{tpu_custom_call.1} parent=1 // pred_check
      %p49 = pneg %p48
    $region11: #{tpu_custom_call.1} parent=1 // pred_check_branch
      %51 = sbr.rel (%p49) target = $region13
    $region12: #{tpu_custom_call.1} parent=1 // pred_region
      %vm52 = vcmask 253952
      %53 = vst.msk [vmem:[#allocation2] sm:$0x1] %vm52, 0.0
      %vm54 = vcmask 57344
      %55 = vst.msk [vmem:[#allocation4] sm:$0x1] %vm54, 0.0
    $region13: #{tpu_custom_call.1} parent=1 // pred_fallthru
      _
    %s56 = sadd.s32 0, 0
    %s57 = smul.u32 %s56, 16
    %v58 = vld [vmem:[%s42] sm:$0xff]
    %v59 = vld [vmem:[%s42 + $0x8] sm:$0xff]
    %v60 = vpack.c.bf16 %v59, %v58
    %v61 = vld [vmem:[%s1] sm:$0xf]
    %v62 = vld [vmem:[%s1 + $0x4] sm:$0xf]
    %v63 = vld [vmem:[%s1 + $0x8] sm:$0xf]
    %v64 = vld [vmem:[%s1 + $0xc] sm:$0xf]
    %v69 = vunpack.c.l.b16 %v61
    %v70 = vunpack.c.l.b16 %v62
    %v71 = vunpack.c.l.b16 %v63
    %v72 = vunpack.c.l.b16 %v64
    %v73 = vpack.c.b16 %v70, %v69
    %v74 = vpack.c.b16 %v72, %v71
    %vm77 = vcmask 261120
    %v79 = vsel %vm77, %v60, 0
    %81 = vmatprep.subr.bf16.mxu0 0
    %82 = vmatpush1.bf16.msra.mxu0 %v73
    %83 = vmatprep.subr.bf16.mxu0 0
    %84 = vmatpush1.bf16.msra.mxu0 %v74
    %85 = vmatprep.subr.bf16.mxu0 0
    %86 = vmatpush1.bf16.msra.mxu0 0
    %87 = vmatprep.subr.bf16.mxu0 0
    %88 = vmatpush1.bf16.msra.mxu0 0
    %89 = vmatprep.subr.bf16.mxu0 0
    %90 = vmatpush1.bf16.msra.mxu0 0
    %91 = vmatprep.subr.bf16.mxu0 0
    %92 = vmatpush1.bf16.msra.mxu0 0
    %93 = vmatprep.subr.bf16.mxu0 0
    %94 = vmatpush1.bf16.msra.mxu0 0
    %95 = vmatprep.subr.bf16.mxu0 0
    %96 = vmatpush1.bf16.msra.mxu0 0
    %97 = vmatprep.subr.bf16.mxu0 0
    %98 = vmatpush1.bf16.msra.mxu0 0
    %99 = vmatprep.subr.bf16.mxu0 0
    %100 = vmatpush1.bf16.msra.mxu0 0
    %101 = vmatprep.subr.bf16.mxu0 0
    %102 = vmatpush1.bf16.msra.mxu0 0
    %103 = vmatprep.subr.bf16.mxu0 0
    %104 = vmatpush1.bf16.msra.mxu0 0
    %105 = vmatprep.subr.bf16.mxu0 0
    %106 = vmatpush1.bf16.msra.mxu0 0
    %107 = vmatprep.subr.bf16.mxu0 0
    %108 = vmatpush1.bf16.msra.mxu0 0
    %109 = vmatprep.subr.bf16.mxu0 0
    %110 = vmatpush1.bf16.msra.mxu0 0
    %111 = vmatprep.subr.bf16.mxu0 0
    %112 = vmatpush1.bf16.msra.mxu0 0
    %113 = vmatprep.mubr.bf16.mxu0 0
    %114 = vmatmul.mubr.bf16.gmra.mrb[0].mxu0 %v79
    %v115 = vpop.f32.mrb[0].mxu0
    %v116 = vadd.f32 0.0, %v115
    %v117 = vpop.f32.mrb[0].mxu0
    %v118 = vpop.f32.mrb[0].mxu0
    %v119 = vadd.f32 0.0, %v118
    %v120 = vpop.f32.mrb[0].mxu0
    %121 = vdwg.mxu0
    %v122 = vmax.f32 %v116, 0.0
    %v123 = vmax.f32 %v119, 0.0
    %v124 = vand.u32 2147483647, %v116
    %v125 = vand.u32 2147483647, %v119
    %v126 = vsub.f32 0.0, %v124
    %v127 = vsub.f32 0.0, %v125
    %v128 = vmul.f32 %v126, 1.442695
    %v129 = vpow.pop %v128
    %v130 = vmul.f32 %v127, 1.442695
    %v131 = vpow.pop %v130
    %v132 = vadd.f32 %v129, 1.0
    %v133 = vlog2.pop %v132
    %v134 = vmul.f32 %v133, 0.6931472
    %v135 = vmul.f32 -0.5, %v129
    %v136 = vadd.f32 %v135, 1.0
    %v137 = vmul.f32 %v136, %v129
    %v138 = vand.u32 2147483647, %v129
    %vm139 = vcmp.lt.f32.partialorder %v138, 0.0004427343
    %v140 = vsel %vm139, %v137, %v134
    %v141 = vadd.f32 %v131, 1.0
    %v142 = vlog2.pop %v141
    %v143 = vmul.f32 %v142, 0.6931472
    %v144 = vmul.f32 -0.5, %v131
    %v145 = vadd.f32 %v144, 1.0
    %v146 = vmul.f32 %v145, %v131
    %v147 = vand.u32 2147483647, %v131
    %vm148 = vcmp.lt.f32.partialorder %v147, 0.0004427343
    %v149 = vsel %vm148, %v146, %v143
    %v150 = vadd.f32 %v122, %v140
    %v151 = vadd.f32 %v123, %v149
    %s152 = sadd.s32 %s57, 16
    %p153 = scmp.le.s32.totalorder %s152, 16
    // Predicated region
    $region14: #{tpu_custom_call.1} parent=1 // pred_check
      %p154 = pneg %p153
    $region15: #{tpu_custom_call.1} parent=1 // pred_check_branch
      %156 = sbr.rel (%p154) target = $region17
    $region16: #{tpu_custom_call.1} parent=1 // pred_region
      %v157 = vld [vmem:[#allocation2] sm:$0x1]
      %vm158 = vcmask 130048
      %v160 = vsel %vm158, 1.0, 0
      %162 = vmatprep.subr.mxu0 0.0
      %163 = vmatpush1.msra.mxu0 %v58
      %164 = vmatprep.subr.mxu0 0.0
      %165 = vmatpush1.msra.mxu0 %v59
      %166 = vmatprep.subr.mxu0 0.0
      %167 = vmatpush1.msra.mxu0 0.0
      %168 = vmatprep.subr.mxu0 0.0
      %169 = vmatpush1.msra.mxu0 0.0
      %170 = vmatprep.subr.mxu0 0.0
      %171 = vmatpush1.msra.mxu0 0.0
      %172 = vmatprep.subr.mxu0 0.0
      %173 = vmatpush1.msra.mxu0 0.0
      %174 = vmatprep.subr.mxu0 0.0
      %175 = vmatpush1.msra.mxu0 0.0
      %176 = vmatprep.subr.mxu0 0.0
      %177 = vmatpush1.msra.mxu0 0.0
      %178 = vmatprep.subr.mxu0 0.0
      %179 = vmatpush1.msra.mxu0 0.0
      %180 = vmatprep.subr.mxu0 0.0
      %181 = vmatpush1.msra.mxu0 0.0
      %182 = vmatprep.subr.mxu0 0.0
      %183 = vmatpush1.msra.mxu0 0.0
      %184 = vmatprep.subr.mxu0 0.0
      %185 = vmatpush1.msra.mxu0 0.0
      %186 = vmatprep.subr.mxu0 0.0
      %187 = vmatpush1.msra.mxu0 0.0
      %188 = vmatprep.subr.mxu0 0.0
      %189 = vmatpush1.msra.mxu0 0.0
      %190 = vmatprep.subr.mxu0 0.0
      %191 = vmatpush1.msra.mxu0 0.0
      %192 = vmatprep.subr.mxu0 0.0
      %193 = vmatpush1.msra.mxu0 0.0
      %194 = vmatprep.subr.mxu0 0.0
      %195 = vmatpush1.msra.mxu0 0.0
      %196 = vmatprep.subr.mxu0 0.0
      %197 = vmatpush1.msra.mxu0 0.0
      %198 = vmatprep.subr.mxu0 0.0
      %199 = vmatpush1.msra.mxu0 0.0
      %200 = vmatprep.subr.mxu0 0.0
      %201 = vmatpush1.msra.mxu0 0.0
      %202 = vmatprep.subr.mxu0 0.0
      %203 = vmatpush1.msra.mxu0 0.0
      %204 = vmatprep.subr.mxu0 0.0
      %205 = vmatpush1.msra.mxu0 0.0
      %206 = vmatprep.subr.mxu0 0.0
      %207 = vmatpush1.msra.mxu0 0.0
      %208 = vmatprep.subr.mxu0 0.0
      %209 = vmatpush1.msra.mxu0 0.0
      %210 = vmatprep.subr.mxu0 0.0
      %211 = vmatpush1.msra.mxu0 0.0
      %212 = vmatprep.subr.mxu0 0.0
      %213 = vmatpush1.msra.mxu0 0.0
      %214 = vmatprep.subr.mxu0 0.0
      %215 = vmatpush1.msra.mxu0 0.0
      %216 = vmatprep.subr.mxu0 0.0
      %217 = vmatpush1.msra.mxu0 0.0
      %218 = vmatprep.subr.mxu0 0.0
      %219 = vmatpush1.msra.mxu0 0.0
      %220 = vmatprep.subr.mxu0 0.0
      %221 = vmatpush1.msra.mxu0 0.0
      %222 = vmatprep.subr.mxu0 0.0
      %223 = vmatpush1.msra.mxu0 0.0
      %224 = vmatprep.subr.mxu0 0.0
      %225 = vmatpush1.msra.mxu0 0.0
      %226 = vmatprep.mubr.f32.mxu0 0.0
      %227 = vmatmul.mubr.f32.gmra.mrb[0].mxu0 %v160
      %v228 = vpop.f32.mrb[0].mxu0
      %v229 = vadd.f32 0.0, %v228
      %v230 = vpop.f32.mrb[0].mxu0
      %231 = vdwg.mxu0
      %v232 = vadd.f32 %v157, %v229
      %vm233 = vcmask 253952
      %234 = vst.msk [vmem:[#allocation2] sm:$0x1] %vm233, %v232
      %v235 = vld [vmem:[#allocation4] sm:$0x1]
      %236 = vmatprep.subr.mxu0 0.0
      %237 = vmatpush1.msra.mxu0 %v150
      %238 = vmatprep.subr.mxu0 0.0
      %239 = vmatpush1.msra.mxu0 %v151
      %240 = vmatprep.subr.mxu0 0.0
      %241 = vmatpush1.msra.mxu0 0.0
      %242 = vmatprep.subr.mxu0 0.0
      %243 = vmatpush1.msra.mxu0 0.0
      %244 = vmatprep.subr.mxu0 0.0
      %245 = vmatpush1.msra.mxu0 0.0
      %246 = vmatprep.subr.mxu0 0.0
      %247 = vmatpush1.msra.mxu0 0.0
      %248 = vmatprep.subr.mxu0 0.0
      %249 = vmatpush1.msra.mxu0 0.0
      %250 = vmatprep.subr.mxu0 0.0
      %251 = vmatpush1.msra.mxu0 0.0
      %252 = vmatprep.subr.mxu0 0.0
      %253 = vmatpush1.msra.mxu0 0.0
      %254 = vmatprep.subr.mxu0 0.0
      %255 = vmatpush1.msra.mxu0 0.0
      %256 = vmatprep.subr.mxu0 0.0
      %257 = vmatpush1.msra.mxu0 0.0
      %258 = vmatprep.subr.mxu0 0.0
      %259 = vmatpush1.msra.mxu0 0.0
      %260 = vmatprep.subr.mxu0 0.0
      %261 = vmatpush1.msra.mxu0 0.0
      %262 = vmatprep.subr.mxu0 0.0
      %263 = vmatpush1.msra.mxu0 0.0
      %264 = vmatprep.subr.mxu0 0.0
      %265 = vmatpush1.msra.mxu0 0.0
      %266 = vmatprep.subr.mxu0 0.0
      %267 = vmatpush1.msra.mxu0 0.0
      %268 = vmatprep.subr.mxu0 0.0
      %269 = vmatpush1.msra.mxu0 0.0
      %270 = vmatprep.subr.mxu0 0.0
      %271 = vmatpush1.msra.mxu0 0.0
      %272 = vmatprep.subr.mxu0 0.0
      %273 = vmatpush1.msra.mxu0 0.0
      %274 = vmatprep.subr.mxu0 0.0
      %275 = vmatpush1.msra.mxu0 0.0
      %276 = vmatprep.subr.mxu0 0.0
      %277 = vmatpush1.msra.mxu0 0.0
      %278 = vmatprep.subr.mxu0 0.0
      %279 = vmatpush1.msra.mxu0 0.0
      %280 = vmatprep.subr.mxu0 0.0
      %281 = vmatpush1.msra.mxu0 0.0
      %282 = vmatprep.subr.mxu0 0.0
      %283 = vmatpush1.msra.mxu0 0.0
      %284 = vmatprep.subr.mxu0 0.0
      %285 = vmatpush1.msra.mxu0 0.0
      %286 = vmatprep.subr.mxu0 0.0
      %287 = vmatpush1.msra.mxu0 0.0
      %288 = vmatprep.subr.mxu0 0.0
      %289 = vmatpush1.msra.mxu0 0.0
      %290 = vmatprep.subr.mxu0 0.0
      %291 = vmatpush1.msra.mxu0 0.0
      %292 = vmatprep.subr.mxu0 0.0
      %293 = vmatpush1.msra.mxu0 0.0
      %294 = vmatprep.subr.mxu0 0.0
      %295 = vmatpush1.msra.mxu0 0.0
      %296 = vmatprep.subr.mxu0 0.0
      %297 = vmatpush1.msra.mxu0 0.0
      %298 = vmatprep.subr.mxu0 0.0
      %299 = vmatpush1.msra.mxu0 0.0
      %300 = vmatprep.mubr.f32.mxu0 0.0
      %301 = vmatmul.mubr.f32.gmra.mrb[0].mxu0 %v160
      %v302 = vpop.f32.mrb[0].mxu0
      %v303 = vadd.f32 0.0, %v302
      %v304 = vpop.f32.mrb[0].mxu0
      %305 = vdwg.mxu0
      %v306 = vadd.f32 %v235, %v303
      %vm307 = vcmask 57344
      %308 = vst.msk [vmem:[#allocation4] sm:$0x1] %vm307, %v306
    $region17: #{tpu_custom_call.1} parent=1 // pred_fallthru
      _
    %p309 = scmp.gt.s32.totalorder %s152, 16
    // Predicated region
    $region18: #{tpu_custom_call.1} parent=1 // pred_check
      %p310 = pneg %p309
    $region19: #{tpu_custom_call.1} parent=1 // pred_check_branch
      %312 = sbr.rel (%p310) target = $region21
    $region20: #{tpu_custom_call.1} parent=1 // pred_region
      %v313 = vlaneseq
      %v314 = vshrl.u32 %v313, 7
      %v315 = vadd.s32 %v314, 8
      %v316 = vstv %s57
      %v317 = vadd.s32 %v316, %v314
      %v318 = vadd.s32 %v316, %v315
      %vm319 = vcmp.lt.s32.totalorder %v317, 16
      %vm320 = vcmp.lt.s32.totalorder %v318, 16
      %v321 = vsel %vm319, 1, 0
      %v322 = vsel %vm320, 1, 0
      %vm323 = vcmp.eq.s32.totalorder %v321, 1
      %vm324 = vcmp.eq.s32.totalorder %v322, 1
      %v325 = vsel %vm323, %v58, 0.0
      %v326 = vsel %vm324, %v59, 0.0
      %v327 = vsel %vm323, %v150, 0.0
      %v328 = vsel %vm324, %v151, 0.0
      %v329 = vld [vmem:[#allocation2] sm:$0x1]
      %vm330 = vcmask 130048
      %v332 = vsel %vm330, 1.0, 0
      %334 = vmatprep.subr.mxu0 0.0
      %335 = vmatpush1.msra.mxu0 %v325
      %336 = vmatprep.subr.mxu0 0.0
      %337 = vmatpush1.msra.mxu0 %v326
      %338 = vmatprep.subr.mxu0 0.0
      %339 = vmatpush1.msra.mxu0 0.0
      %340 = vmatprep.subr.mxu0 0.0
      %341 = vmatpush1.msra.mxu0 0.0
      %342 = vmatprep.subr.mxu0 0.0
      %343 = vmatpush1.msra.mxu0 0.0
      %344 = vmatprep.subr.mxu0 0.0
      %345 = vmatpush1.msra.mxu0 0.0
      %346 = vmatprep.subr.mxu0 0.0
      %347 = vmatpush1.msra.mxu0 0.0
      %348 = vmatprep.subr.mxu0 0.0
      %349 = vmatpush1.msra.mxu0 0.0
      %350 = vmatprep.subr.mxu0 0.0
      %351 = vmatpush1.msra.mxu0 0.0
      %352 = vmatprep.subr.mxu0 0.0
      %353 = vmatpush1.msra.mxu0 0.0
      %354 = vmatprep.subr.mxu0 0.0
      %355 = vmatpush1.msra.mxu0 0.0
      %356 = vmatprep.subr.mxu0 0.0
      %357 = vmatpush1.msra.mxu0 0.0
      %358 = vmatprep.subr.mxu0 0.0
      %359 = vmatpush1.msra.mxu0 0.0
      %360 = vmatprep.subr.mxu0 0.0
      %361 = vmatpush1.msra.mxu0 0.0
      %362 = vmatprep.subr.mxu0 0.0
      %363 = vmatpush1.msra.mxu0 0.0
      %364 = vmatprep.subr.mxu0 0.0
      %365 = vmatpush1.msra.mxu0 0.0
      %366 = vmatprep.subr.mxu0 0.0
      %367 = vmatpush1.msra.mxu0 0.0
      %368 = vmatprep.subr.mxu0 0.0
      %369 = vmatpush1.msra.mxu0 0.0
      %370 = vmatprep.subr.mxu0 0.0
      %371 = vmatpush1.msra.mxu0 0.0
      %372 = vmatprep.subr.mxu0 0.0
      %373 = vmatpush1.msra.mxu0 0.0
      %374 = vmatprep.subr.mxu0 0.0
      %375 = vmatpush1.msra.mxu0 0.0
      %376 = vmatprep.subr.mxu0 0.0
      %377 = vmatpush1.msra.mxu0 0.0
      %378 = vmatprep.subr.mxu0 0.0
      %379 = vmatpush1.msra.mxu0 0.0
      %380 = vmatprep.subr.mxu0 0.0
      %381 = vmatpush1.msra.mxu0 0.0
      %382 = vmatprep.subr.mxu0 0.0
      %383 = vmatpush1.msra.mxu0 0.0
      %384 = vmatprep.subr.mxu0 0.0
      %385 = vmatpush1.msra.mxu0 0.0
      %386 = vmatprep.subr.mxu0 0.0
      %387 = vmatpush1.msra.mxu0 0.0
      %388 = vmatprep.subr.mxu0 0.0
      %389 = vmatpush1.msra.mxu0 0.0
      %390 = vmatprep.subr.mxu0 0.0
      %391 = vmatpush1.msra.mxu0 0.0
      %392 = vmatprep.subr.mxu0 0.0
      %393 = vmatpush1.msra.mxu0 0.0
      %394 = vmatprep.subr.mxu0 0.0
      %395 = vmatpush1.msra.mxu0 0.0
      %396 = vmatprep.subr.mxu0 0.0
      %397 = vmatpush1.msra.mxu0 0.0
      %398 = vmatprep.mubr.f32.mxu0 0.0
      %399 = vmatmul.mubr.f32.gmra.mrb[0].mxu0 %v332
      %v400 = vpop.f32.mrb[0].mxu0
      %v401 = vadd.f32 0.0, %v400
      %v402 = vpop.f32.mrb[0].mxu0
      %403 = vdwg.mxu0
      %v404 = vadd.f32 %v329, %v401
      %vm405 = vcmask 253952
      %406 = vst.msk [vmem:[#allocation2] sm:$0x1] %vm405, %v404
      %v407 = vld [vmem:[#allocation4] sm:$0x1]
      %408 = vmatprep.subr.mxu0 0.0
      %409 = vmatpush1.msra.mxu0 %v327
      %410 = vmatprep.subr.mxu0 0.0
      %411 = vmatpush1.msra.mxu0 %v328
      %412 = vmatprep.subr.mxu0 0.0
      %413 = vmatpush1.msra.mxu0 0.0
      %414 = vmatprep.subr.mxu0 0.0
      %415 = vmatpush1.msra.mxu0 0.0
      %416 = vmatprep.subr.mxu0 0.0
      %417 = vmatpush1.msra.mxu0 0.0
      %418 = vmatprep.subr.mxu0 0.0
      %419 = vmatpush1.msra.mxu0 0.0
      %420 = vmatprep.subr.mxu0 0.0
      %421 = vmatpush1.msra.mxu0 0.0
      %422 = vmatprep.subr.mxu0 0.0
      %423 = vmatpush1.msra.mxu0 0.0
      %424 = vmatprep.subr.mxu0 0.0
      %425 = vmatpush1.msra.mxu0 0.0
      %426 = vmatprep.subr.mxu0 0.0
      %427 = vmatpush1.msra.mxu0 0.0
      %428 = vmatprep.subr.mxu0 0.0
      %429 = vmatpush1.msra.mxu0 0.0
      %430 = vmatprep.subr.mxu0 0.0
      %431 = vmatpush1.msra.mxu0 0.0
      %432 = vmatprep.subr.mxu0 0.0
      %433 = vmatpush1.msra.mxu0 0.0
      %434 = vmatprep.subr.mxu0 0.0
      %435 = vmatpush1.msra.mxu0 0.0
      %436 = vmatprep.subr.mxu0 0.0
      %437 = vmatpush1.msra.mxu0 0.0
      %438 = vmatprep.subr.mxu0 0.0
      %439 = vmatpush1.msra.mxu0 0.0
      %440 = vmatprep.subr.mxu0 0.0
      %441 = vmatpush1.msra.mxu0 0.0
      %442 = vmatprep.subr.mxu0 0.0
      %443 = vmatpush1.msra.mxu0 0.0
      %444 = vmatprep.subr.mxu0 0.0
      %445 = vmatpush1.msra.mxu0 0.0
      %446 = vmatprep.subr.mxu0 0.0
      %447 = vmatpush1.msra.mxu0 0.0
      %448 = vmatprep.subr.mxu0 0.0
      %449 = vmatpush1.msra.mxu0 0.0
      %450 = vmatprep.subr.mxu0 0.0
      %451 = vmatpush1.msra.mxu0 0.0
      %452 = vmatprep.subr.mxu0 0.0
      %453 = vmatpush1.msra.mxu0 0.0
      %454 = vmatprep.subr.mxu0 0.0
      %455 = vmatpush1.msra.mxu0 0.0
      %456 = vmatprep.subr.mxu0 0.0
      %457 = vmatpush1.msra.mxu0 0.0
      %458 = vmatprep.subr.mxu0 0.0
      %459 = vmatpush1.msra.mxu0 0.0
      %460 = vmatprep.subr.mxu0 0.0
      %461 = vmatpush1.msra.mxu0 0.0
      %462 = vmatprep.subr.mxu0 0.0
      %463 = vmatpush1.msra.mxu0 0.0
      %464 = vmatprep.subr.mxu0 0.0
      %465 = vmatpush1.msra.mxu0 0.0
      %466 = vmatprep.subr.mxu0 0.0
      %467 = vmatpush1.msra.mxu0 0.0
      %468 = vmatprep.subr.mxu0 0.0
      %469 = vmatpush1.msra.mxu0 0.0
      %470 = vmatprep.subr.mxu0 0.0
      %471 = vmatpush1.msra.mxu0 0.0
      %472 = vmatprep.mubr.f32.mxu0 0.0
      %473 = vmatmul.mubr.f32.gmra.mrb[0].mxu0 %v332
      %v474 = vpop.f32.mrb[0].mxu0
      %v475 = vadd.f32 0.0, %v474
      %v476 = vpop.f32.mrb[0].mxu0
      %477 = vdwg.mxu0
      %v478 = vadd.f32 %v407, %v475
      %vm479 = vcmask 57344
      %480 = vst.msk [vmem:[#allocation4] sm:$0x1] %vm479, %v478
    $region21: #{tpu_custom_call.1} parent=1 // pred_fallthru
      _
    // Predicated region
    $region22: #{tpu_custom_call.1} parent=1 // pred_check
      _
    $region23: #{tpu_custom_call.1} parent=1 // pred_check_branch
      %482 = sbr.rel (0) target = $region25
    $region24: #{tpu_custom_call.1} parent=1 // pred_region
      %s484 = ssub.s32 16, 16
      %485 = vsyncadd [#allocation3], %s484
      %s487 = sshll.u32 [#allocation2], 4
      %s488 = int_to_ptr.vmem [resolvable:$true] %s487
      %490 = dma.vmem_to_hbm [thread:$0]  %s488, 16, %s2, [#allocation3]
    $region25: #{tpu_custom_call.1} parent=1 // pred_fallthru
      _
    // Predicated region
    $region26: #{tpu_custom_call.1} parent=1 // pred_check
      _
    $region27: #{tpu_custom_call.1} parent=1 // pred_check_branch
      %492 = sbr.rel (0) target = $region29
    $region28: #{tpu_custom_call.1} parent=1 // pred_region
      %s494 = ssub.s32 16, 16
      %495 = vsyncadd [#allocation5], %s494
      %s497 = sshll.u32 [#allocation4], 4
      %s498 = int_to_ptr.vmem [resolvable:$true] %s497
      %500 = dma.vmem_to_hbm [thread:$0]  %s498, 16, %s3, [#allocation5]
    $region29: #{tpu_custom_call.1} parent=1 // pred_fallthru
      _
    // Predicated region
    $region30: #{tpu_custom_call.1} parent=1 // pred_check
      _
    $region31: #{tpu_custom_call.1} parent=1 // pred_check_branch
      %502 = sbr.rel (0) target = $region33
    $region32: #{tpu_custom_call.1} parent=1 // pred_region
      %503 = dma.done [#allocation3], 16
    $region33: #{tpu_custom_call.1} parent=1 // pred_fallthru
      _
    // Predicated region
    $region34: #{tpu_custom_call.1} parent=1 // pred_check
      _
    $region35: #{tpu_custom_call.1} parent=1 // pred_check_branch
      %505 = sbr.rel (0) target = $region37
    $region36: #{tpu_custom_call.1} parent=1 // pred_region
      %506 = dma.done [#allocation5], 16
    $region37: #{tpu_custom_call.1} parent=1 // pred_fallthru
      _
    %507 = vsyncpa [#allocation3], 1
    %508 = vsyncpa [#allocation5], 1

</llo_original>
